<compile_context>
chip_gen: v7x
topology: tpu7x:2x2x1
jax: 0.10.0
libtpu: 0.0.40
codegen_flags: <defaults>
</compile_context>

<pallas_src>
import numpy as np
import jax
import jax.numpy as jnp
from jax.experimental import pallas as pl
from jax.experimental.pallas import tpu as pltpu


def _round_up(v, m):
    return (v + m - 1) // m * m


# --------------------------------------------------------------------------
# Kernel: PReLU(A_hat @ x @ W + b), row-tiled, block-sparse K reduction
# --------------------------------------------------------------------------
def _make_kernel(tk, max_kb, x_resident):
    def kernel(kidx_ref, kcnt_ref,            # scalar-prefetch (SMEM)
               alpha_ref,                     # SMEM scalar
               a_ref, x_ref, w_ref, b_ref,    # VMEM inputs
               o_ref,                         # VMEM output
               acc_ref):                      # VMEM scratch (tm, 128) f32
        i = pl.program_id(0)
        k = pl.program_id(1)                  # NOTE: k must stay the innermost
                                              # (fastest) grid axis for the
                                              # init/finalize pattern below.

        @pl.when(k == 0)
        def _init():
            acc_ref[...] = jnp.zeros_like(acc_ref)

        # Only accumulate for real (nonzero) blocks of this row tile; padded
        # tail entries repeat the previous block index so no new DMA happens.
        @pl.when(k < kcnt_ref[i])
        def _accumulate():
            if x_resident:
                off = pl.multiple_of(kidx_ref[i * max_kb + k] * tk, 128)
                xk = x_ref[pl.ds(off, tk), :]
            else:
                xk = x_ref[...]
            acc_ref[...] += jnp.dot(a_ref[...], xk,
                                    preferred_element_type=jnp.float32)

        @pl.when(k == pl.num_programs(1) - 1)
        def _finalize():
            # bf16 epilogue matmul (single-pass MXU), f32 accumulate + bias.
            y = jnp.dot(acc_ref[...].astype(jnp.bfloat16), w_ref[...],
                        preferred_element_type=jnp.float32) + b_ref[...]
            alpha = alpha_ref[0]
            o_ref[...] = jnp.where(y > 0.0, y, alpha * y)

    return kernel


# --------------------------------------------------------------------------
# Wrapper
# --------------------------------------------------------------------------
def feature_decoder_forward(a_hat, x, w, b, prelu_alpha, *,
                            tm=512, tk=1024,
                            matmul_dtype=jnp.bfloat16,
                            x_resident_max_bytes=8 << 20):
    """PReLU(GCNConv(x)) with dense normalized adjacency a_hat.

    a_hat: (n, n), x: (n, cin), w: (cin, cout), b: (cout,), prelu_alpha: (1,).
    For best performance pass a_hat already tile-aligned (multiple of the row /
    reduction tiles) so no padded copy of the N^2 matrix is made here.
    """
    n_rows, n_cols = a_hat.shape
    n, cin = x.shape
    assert n == n_rows == n_cols, "x rows must match a_hat size"
    cout = w.shape[1]
    lane = 128

    # Tiles: multiples of 128, clamped for small graphs.
    tm = max(lane, min(_round_up(tm, lane), _round_up(n_rows, lane)))
    tk = max(lane, min(_round_up(tk, lane), _round_up(n_cols, lane)))
    n_rows_p = _round_up(n_rows, tm)
    n_cols_p = _round_up(n_cols, tk)
    cin_p = _round_up(cin, lane)     # lane-dense accumulator / epilogue
    cout_p = _round_up(cout, lane)   # lane-dense output stores

    # Cast to MXU dtype; pad A only if the caller did not hand us a
    # tile-aligned adjacency (the pad-copy of N^2 is an extra HBM round trip).
    a_p = a_hat.astype(matmul_dtype)
    if a_p.shape != (n_rows_p, n_cols_p):
        a_p = jnp.zeros((n_rows_p, n_cols_p), matmul_dtype
                        ).at[:n_rows, :n_cols].set(a_p)

    x_p = jnp.zeros((n_cols_p, cin_p), matmul_dtype
                    ).at[:n, :cin].set(x.astype(matmul_dtype))
    w_p = jnp.zeros((cin_p, cout_p), jnp.bfloat16
                    ).at[:cin, :cout].set(w.astype(jnp.bfloat16))
    b_p = jnp.zeros((1, cout_p), jnp.float32
                    ).at[0, :cout].set(b.astype(jnp.float32))
    alpha_p = jnp.asarray(prelu_alpha, jnp.float32).reshape(1)

    # ---- block-sparsity metadata (host-side glue; graph structure prep) ----
    n_i = n_rows_p // tm
    n_k = n_cols_p // tk
    blk_nz = np.asarray(jax.device_get(
        jnp.any(a_p.reshape(n_i, tm, n_k, tk) != 0, axis=(1, 3))))
    counts = blk_nz.sum(axis=1).astype(np.int32)
    max_kb = max(1, int(counts.max()))
    kidx = np.zeros((n_i, max_kb), np.int32)
    for ii in range(n_i):
        nz = np.nonzero(blk_nz[ii])[0]
        c = int(nz.size)
        if c:
            kidx[ii, :c] = nz
            kidx[ii, c:] = nz[-1]   # repeat last index -> Pallas skips re-DMA
    kidx_flat = jnp.asarray(kidx.reshape(-1))   # 1D in SMEM (avoid 2D padding)
    kcnt = jnp.asarray(counts)

    # x residency: hold x fully in VMEM when small enough, else stream blocks.
    x_resident = (n_cols_p * cin_p * 2) <= x_resident_max_bytes
    if x_resident:
        x_spec = pl.BlockSpec((n_cols_p, cin_p), lambda i, k, kib, kc: (0, 0))
    else:
        x_spec = pl.BlockSpec(
            (tk, cin_p), lambda i, k, kib, kc: (kib[i * max_kb + k], 0))

    # Scoped-VMEM sizing (v5e default is 16 MiB; v7x physical VMEM is 64 MiB).
    est = (2 * tm * tk * 2                                    # A (dbl buf, bf16)
           + (n_cols_p * cin_p * 2 if x_resident else 2 * tk * cin_p * 2)
           + 2 * cin_p * cout_p * 2 + 2 * cout_p * 4          # W, b
           + 2 * tm * cout_p * 4 + tm * cin_p * 4)            # out, acc
    vmem_limit = int(min(max(2 * est, 32 << 20), 64 << 20))

    grid = (n_i, max_kb)
    kernel = _make_kernel(tk, max_kb, x_resident)

    out = pl.pallas_call(
        kernel,
        out_shape=jax.ShapeDtypeStruct((n_rows_p, cout_p), jnp.float32),
        grid_spec=pltpu.PrefetchScalarGridSpec(
            num_scalar_prefetch=2,
            grid=grid,
            in_specs=[
                pl.BlockSpec(memory_space=pltpu.MemorySpace.SMEM),   # alpha
                pl.BlockSpec((tm, tk),
                             lambda i, k, kib, kc: (i, kib[i * max_kb + k])),
                x_spec,
                pl.BlockSpec((cin_p, cout_p), lambda i, k, kib, kc: (0, 0)),
                pl.BlockSpec((1, cout_p), lambda i, k, kib, kc: (0, 0)),
            ],
            out_specs=pl.BlockSpec((tm, cout_p), lambda i, k, kib, kc: (i, 0)),
            scratch_shapes=[pltpu.VMEM((tm, cin_p), jnp.float32)],
        ),
        compiler_params=pltpu.CompilerParams(
            dimension_semantics=("parallel", "arbitrary"),
            vmem_limit_bytes=vmem_limit),
    )(kidx_flat, kcnt, alpha_p, a_p, x_p, w_p, b_p)

    return out[:n_rows, :cout]


# --------------------------------------------------------------------------
# Deterministic parameter init (matches shapes in FeatureDecoder.__init__)
# --------------------------------------------------------------------------
def glorot(key, shape):
    fan_in, fan_out = shape
    limit = jnp.sqrt(6.0 / (fan_in + fan_out))
    return jax.random.uniform(key, shape, jnp.float32, -limit, limit)


if __name__ == "__main__":
    key = jax.random.PRNGKey(0)
    keys = jax.random.split(key, 8)

    # Small synthetic graph / dims
    N, E = 64, 256
    latent_dim, output_dim = 16, 32
    n_pad = _round_up(N, 128)   # build graph tensors pre-padded: no extra
                                # N^2 pad-copy in front of the kernel

    # inputs
    x = jax.random.normal(keys[0], (N, latent_dim), jnp.float32)
    src = jax.random.randint(keys[1], (E,), 0, N)
    dst = jax.random.randint(keys[2], (E,), 0, N)
    edge_index = jnp.stack([src, dst])  # (2, E)

    # Dense GCN-normalized adjacency built directly at the padded shape:
    # A_hat = D^{-1/2} (A_sym + I) D^{-1/2}; padded rows/cols have zero degree.
    A = jnp.zeros((n_pad, n_pad), jnp.float32).at[dst, src].set(1.0)
    A = jnp.maximum(A, A.T)                                    # undirected
    self_loops = jnp.concatenate([jnp.ones((N,), jnp.float32),
                                  jnp.zeros((n_pad - N,), jnp.float32)])
    A = A + jnp.diag(self_loops)                               # self loops
    deg = A.sum(axis=1)
    dinv = jnp.where(deg > 0, 1.0 / jnp.sqrt(jnp.maximum(deg, 1e-12)), 0.0)
    a_hat = dinv[:, None] * A * dinv[None, :]

    x_pad = jnp.zeros((n_pad, latent_dim), jnp.float32).at[:N].set(x)

    # GCNConv parameters (W stored as (in, out) == nn.Linear weight.T)
    w = glorot(keys[3], (latent_dim, output_dim))
    b = 0.1 * jax.random.normal(keys[4], (output_dim,), jnp.float32)
    prelu_alpha = jnp.array([0.25], jnp.float32)   # nn.PReLU() default

    # --- Pallas forward ---
    h = feature_decoder_forward(a_hat, x_pad, w, b, prelu_alpha)[:N]

    # --- pure-JAX f32 reference (loose tol: MXU operands are bf16) ---
    y_ref = a_hat @ (x_pad @ w) + b[None, :]
    h_ref = jnp.where(y_ref > 0, y_ref, prelu_alpha[0] * y_ref)[:N]
    max_err = float(jnp.max(jnp.abs(h - h_ref)))
    assert max_err < 3e-2, f"mismatch vs reference: {max_err}"

    jax.block_until_ready(h)
    print("KERNEL_OK")
</pallas_src>

<mosaic_0001>
module attributes {stable_mosaic.version = 11 : i64} {
  func.func @kernel(%arg0: i32, %arg1: i32, %arg2: memref<1xi32, #tpu.memory_space<smem>>, %arg3: memref<1xi32, #tpu.memory_space<smem>>, %arg4: memref<1xf32, #tpu.memory_space<smem>>, %arg5: memref<128x128xbf16, #tpu.memory_space<vmem>>, %arg6: memref<128x128xbf16, #tpu.memory_space<vmem>>, %arg7: memref<128x128xbf16, #tpu.memory_space<vmem>>, %arg8: memref<1x128xf32, #tpu.memory_space<vmem>>, %arg9: memref<128x128xf32, #tpu.memory_space<vmem>>, %arg10: memref<128x128xf32, #tpu.memory_space<vmem>>) attributes {dimension_semantics = [#tpu.dimension_semantics<parallel>, #tpu.dimension_semantics<arbitrary>], iteration_bounds = array<i64: 1, 1>, scalar_prefetch = 2 : i64, scratch_operands = 1 : i64, tpu.core_type = #tpu.core_type<tc>, window_params = [{transform_indices = @transform_0, window_bounds = array<i64: 1>}, {transform_indices = @transform_1, window_bounds = array<i64: 128, 128>}, {pipeline_mode = #tpu.pipeline_mode<synchronous>, transform_indices = @transform_2, window_bounds = array<i64: 128, 128>}, {pipeline_mode = #tpu.pipeline_mode<synchronous>, transform_indices = @transform_3, window_bounds = array<i64: 128, 128>}, {pipeline_mode = #tpu.pipeline_mode<synchronous>, transform_indices = @transform_4, window_bounds = array<i64: 1, 128>}, {transform_indices = @transform_5, window_bounds = array<i64: 128, 128>}]} {
    %c0_i32 = arith.constant 0 : i32
    %0 = arith.cmpi eq, %arg1, %c0_i32 : i32
    %1 = arith.extui %0 : i1 to i32
    %c0_i32_0 = arith.constant 0 : i32
    %2 = arith.cmpi ne, %1, %c0_i32_0 : i32
    scf.if %2 {
      %cst = arith.constant 0.000000e+00 : f32
      %11 = vector.broadcast %cst : f32 to vector<128x128xf32>
      %c0 = arith.constant 0 : index
      %c0_4 = arith.constant 0 : index
      %12 = vector.load %arg10[%c0, %c0_4] : memref<128x128xf32, #tpu.memory_space<vmem>>, vector<128x128xf32>
      tpu.vector_store %arg10[%c0, %c0_4], %11 {strides = array<i32>} : memref<128x128xf32, #tpu.memory_space<vmem>>, vector<128x128xf32>,
    } else {
    }
    %3 = arith.index_cast %arg0 : i32 to index
    %4 = memref.load %arg3[%3] : memref<1xi32, #tpu.memory_space<smem>>
    %5 = arith.cmpi slt, %arg1, %4 : i32
    %6 = arith.extui %5 : i1 to i32
    %c0_i32_1 = arith.constant 0 : i32
    %7 = arith.cmpi ne, %6, %c0_i32_1 : i32
    scf.if %7 {
      %c1_i32 = arith.constant 1 : i32
      %11 = arith.muli %arg0, %c1_i32 : i32
      %12 = arith.addi %11, %arg1 : i32
      %13 = arith.index_cast %12 : i32 to index
      %14 = memref.load %arg2[%13] : memref<1xi32, #tpu.memory_space<smem>>
      %c128_i32 = arith.constant 128 : i32
      %15 = arith.muli %14, %c128_i32 : i32
      %16 = tpu.assume_multiple %15, 128 : i32
      %17 = arith.index_cast %16 : i32 to index
      %c0 = arith.constant 0 : index
      %18 = vector.load %arg6[%17, %c0] : memref<128x128xbf16, #tpu.memory_space<vmem>>, vector<128x128xbf16>
      %c0_4 = arith.constant 0 : index
      %c0_5 = arith.constant 0 : index
      %19 = vector.load %arg10[%c0_4, %c0_5] : memref<128x128xf32, #tpu.memory_space<vmem>>, vector<128x128xf32>
      %c0_6 = arith.constant 0 : index
      %c0_7 = arith.constant 0 : index
      %20 = vector.load %arg5[%c0_6, %c0_7] : memref<128x128xbf16, #tpu.memory_space<vmem>>, vector<128x128xbf16>
      %cst = arith.constant dense<0.000000e+00> : vector<128x128xf32>
      %21 = tpu.matmul %20, %18, %cst {dimension_numbers = #tpu.dot_dimension_numbers<[1], [0], [0], [1], [0, 0, 1, 1], [], []>} : vector<128x128xbf16>, vector<128x128xbf16>, vector<128x128xf32> -> vector<128x128xf32>
      %22 = arith.addf %19, %21 : vector<128x128xf32>
      %c0_8 = arith.constant 0 : index
      %c0_9 = arith.constant 0 : index
      %23 = vector.load %arg10[%c0_8, %c0_9] : memref<128x128xf32, #tpu.memory_space<vmem>>, vector<128x128xf32>
      tpu.vector_store %arg10[%c0_8, %c0_9], %22 {strides = array<i32>} : memref<128x128xf32, #tpu.memory_space<vmem>>, vector<128x128xf32>,
    } else {
    }
    %c0_i32_2 = arith.constant 0 : i32
    %8 = arith.cmpi eq, %arg1, %c0_i32_2 : i32
    %9 = arith.extui %8 : i1 to i32
    %c0_i32_3 = arith.constant 0 : i32
    %10 = arith.cmpi ne, %9, %c0_i32_3 : i32
    scf.if %10 {
      %c0 = arith.constant 0 : index
      %c0_4 = arith.constant 0 : index
      %11 = vector.load %arg10[%c0, %c0_4] : memref<128x128xf32, #tpu.memory_space<vmem>>, vector<128x128xf32>
      %12 = arith.truncf %11 : vector<128x128xf32> to vector<128x128xbf16>
      %c0_5 = arith.constant 0 : index
      %c0_6 = arith.constant 0 : index
      %13 = vector.load %arg7[%c0_5, %c0_6] : memref<128x128xbf16, #tpu.memory_space<vmem>>, vector<128x128xbf16>
      %cst = arith.constant dense<0.000000e+00> : vector<128x128xf32>
      %14 = tpu.matmul %12, %13, %cst {dimension_numbers = #tpu.dot_dimension_numbers<[1], [0], [0], [1], [0, 0, 1, 1], [], []>} : vector<128x128xbf16>, vector<128x128xbf16>, vector<128x128xf32> -> vector<128x128xf32>
      %c0_7 = arith.constant 0 : index
      %c0_8 = arith.constant 0 : index
      %15 = vector.load %arg8[%c0_7, %c0_8] : memref<1x128xf32, #tpu.memory_space<vmem>>, vector<1x128xf32>
      %16 = vector.broadcast %15 : vector<1x128xf32> to vector<128x128xf32>
      %17 = arith.addf %14, %16 : vector<128x128xf32>
      %c0_9 = arith.constant 0 : index
      %18 = memref.load %arg4[%c0_9] : memref<1xf32, #tpu.memory_space<smem>>
      %cst_10 = arith.constant 0.000000e+00 : f32
      %19 = vector.broadcast %cst_10 : f32 to vector<128x128xf32>
      %20 = arith.cmpf ogt, %17, %19 : vector<128x128xf32>
      %21 = vector.broadcast %18 : f32 to vector<128x128xf32>
      %22 = arith.mulf %21, %17 : vector<128x128xf32>
      %23 = arith.select %20, %17, %22 : vector<128x128xi1>, vector<128x128xf32>
      %c0_11 = arith.constant 0 : index
      %c0_12 = arith.constant 0 : index
      %24 = vector.load %arg9[%c0_11, %c0_12] : memref<128x128xf32, #tpu.memory_space<vmem>>, vector<128x128xf32>
      tpu.vector_store %arg9[%c0_11, %c0_12], %23 {strides = array<i32>} : memref<128x128xf32, #tpu.memory_space<vmem>>, vector<128x128xf32>,
    } else {
    }
    return
  }
  func.func @transform_0(%arg0: i32, %arg1: i32, %arg2: memref<1xi32, #tpu.memory_space<smem>>, %arg3: memref<1xi32, #tpu.memory_space<smem>>) -> i32 {
    %c0_i32 = arith.constant 0 : i32
    %c0_i32_0 = arith.constant 0 : i32
    return %c0_i32 : i32
  }
  func.func @transform_1(%arg0: i32, %arg1: i32, %arg2: memref<1xi32, #tpu.memory_space<smem>>, %arg3: memref<1xi32, #tpu.memory_space<smem>>) -> (i32, i32) {
    %c1_i32 = arith.constant 1 : i32
    %0 = arith.muli %arg0, %c1_i32 : i32
    %1 = arith.addi %0, %arg1 : i32
    %2 = arith.index_cast %1 : i32 to index
    %3 = memref.load %arg2[%2] : memref<1xi32, #tpu.memory_space<smem>>
    %c0_i32 = arith.constant 0 : i32
    return %arg0, %3 : i32, i32
  }
  func.func @transform_2(%arg0: i32, %arg1: i32, %arg2: memref<1xi32, #tpu.memory_space<smem>>, %arg3: memref<1xi32, #tpu.memory_space<smem>>) -> (i32, i32) {
    %c0_i32 = arith.constant 0 : i32
    %c0_i32_0 = arith.constant 0 : i32
    %c0_i32_1 = arith.constant 0 : i32
    return %c0_i32, %c0_i32_0 : i32, i32
  }
  func.func @transform_3(%arg0: i32, %arg1: i32, %arg2: memref<1xi32, #tpu.memory_space<smem>>, %arg3: memref<1xi32, #tpu.memory_space<smem>>) -> (i32, i32) {
    %c0_i32 = arith.constant 0 : i32
    %c0_i32_0 = arith.constant 0 : i32
    %c0_i32_1 = arith.constant 0 : i32
    return %c0_i32, %c0_i32_0 : i32, i32
  }
  func.func @transform_4(%arg0: i32, %arg1: i32, %arg2: memref<1xi32, #tpu.memory_space<smem>>, %arg3: memref<1xi32, #tpu.memory_space<smem>>) -> (i32, i32) {
    %c0_i32 = arith.constant 0 : i32
    %c0_i32_0 = arith.constant 0 : i32
    %c0_i32_1 = arith.constant 0 : i32
    return %c0_i32, %c0_i32_0 : i32, i32
  }
  func.func @transform_5(%arg0: i32, %arg1: i32, %arg2: memref<1xi32, #tpu.memory_space<smem>>, %arg3: memref<1xi32, #tpu.memory_space<smem>>) -> (i32, i32) {
    %c0_i32 = arith.constant 0 : i32
    %c0_i32_0 = arith.constant 0 : i32
    return %arg0, %c0_i32 : i32, i32
  }
}

</mosaic_0001>

<llo_original>
// kernel: tpu_custom_call.1
$region0: #{tpu_custom_call.1}
  #allocation0 [shape = 'u32[]', space=smem, size = 0x4, offset = 0x4, fixed_abs, tag = 'smem constant byte address 0x4 - core index']
  #allocation1 [shape = 'u32[144,128]{1,0:T(1,128)}', space=vmem, size = 0x12000, scoped, tag = 'internal scratch']
  #allocation2 [shape = 'f32[128,128]{1,0:T(8,128)}', space=vmem, size = 0x10000, scoped, tag = 'scratch operand']
  #allocation3 [shape = 's32[1]{0}', space=sflag, size = 0x4, scoped, tag = 'scoped memory for tpu_custom_call.1']
  #allocation4 [shape = 's32[1]{0:T(128)S(6)}', space=smem, size = 0x200, scoped, tag = 'prefetched SMEM operand 0']
  #allocation5 [shape = 's32[1]{0:T(128)S(6)}', space=smem, size = 0x200, scoped, tag = 'prefetched SMEM operand 1']
  #allocation6 [shape = 'f32[1]{0:T(128)S(6)}', space=smem, size = 0x200, scoped, tag = 'scoped memory for tpu_custom_call.1']
  %s0 = inlined_call_operand.<no memory space> [shape: s32[1], index: 0, kind: input, shape index: {}]
  %s1 = inlined_call_operand.<no memory space> [shape: s32[1], index: 1, kind: input, shape index: {}]
  %s2 = inlined_call_operand.<no memory space> [shape: f32[1], index: 2, kind: input, shape index: {}]
  %s3 = inlined_call_operand.hbm [shape: bf16[128,128], index: 3, kind: input, shape index: {}]
  %s4 = inlined_call_operand.hbm [shape: bf16[128,128], index: 4, kind: input, shape index: {}]
  %s5 = inlined_call_operand.hbm [shape: bf16[128,128], index: 5, kind: input, shape index: {}]
  %s6 = inlined_call_operand.vmem [shape: f32[1,128], index: 6, kind: input, shape index: {}]
  %s7 = inlined_call_operand.hbm [shape: f32[128,128], index: 7, kind: output, shape index: {}]
  %s8 = sld [smem:[#allocation0]]
  $region54: #{tpu_custom_call.1} parent=0
    _
  %s10 = ssub.s32 1, %s8
  %s11 = scalar_select 0, %s10, %s8
  %12 = sst [smem:[#allocation4]] %s0
  %13 = sst [smem:[#allocation5]] %s1
  %14 = sst [smem:[#allocation6]] %s2
  $region1: #{tpu_custom_call.1} parent=0
    #allocation7 [shape = 'u8[32768]{0}', space=vmem, size = 0x8000, scoped, tag = 'input window, operand 3, single buffered']
    #allocation8 [shape = 's32[1]{0}', space=sflag, size = 0x4, scoped, tag = 'scoped memory for tpu_custom_call.1']
    #allocation9 [shape = 's32[1]{0}', space=sflag, size = 0x4, scoped, tag = 'scoped memory for tpu_custom_call.1']
    #allocation10 [shape = 'u8[32768]{0}', space=vmem, size = 0x8000, scoped, tag = 'input window, operand 4, single buffered']
    #allocation11 [shape = 's32[1]{0}', space=sflag, size = 0x4, scoped, tag = 'scoped memory for tpu_custom_call.1']
    #allocation12 [shape = 'u8[32768]{0}', space=vmem, size = 0x8000, scoped, tag = 'input window, operand 5, single buffered']
    #allocation13 [shape = 'u8[65536]{0}', space=vmem, size = 0x10000, scoped, tag = 'output window, operand 0, single buffered']
    %15 = vsyncpa [#allocation8], 0
    %16 = vsyncpa [#allocation11], 0
    %17 = vsyncpa [#allocation9], 0
    // Predicated region
    $region2: #{tpu_custom_call.1} parent=1 // pred_check
      _
    $region3: #{tpu_custom_call.1} parent=1 // pred_check_branch
      %19 = sbr.rel (0) target = $region5
    $region4: #{tpu_custom_call.1} parent=1 // pred_region
      _
    $region5: #{tpu_custom_call.1} parent=1 // pred_fallthru
      _
    // Predicated region
    $region6: #{tpu_custom_call.1} parent=1 // pred_check
      _
    $region7: #{tpu_custom_call.1} parent=1 // pred_check_branch
      %21 = sbr.rel (0) target = $region9
    $region8: #{tpu_custom_call.1} parent=1 // pred_region
      %s22 = sadd.s32 0, 0
      %s23 = sld [smem:[#allocation4 + %s22]]
      %s25 = ssub.s32 1024, 1024
      %26 = vsyncadd [#allocation8], %s25
      %s27 = smul.addr %s23, 64
      %s28 = scalar_lea.hbm %s3, %s27
      %s29 = sshll.u32 [#allocation7], 4
      %s30 = int_to_ptr.vmem [resolvable:$true] %s29
      %35 = dma.hbm_to_vmem [thread:$0]  %s28, 1024, %s30, [#allocation8], 64, 64, 4
    $region9: #{tpu_custom_call.1} parent=1 // pred_fallthru
      _
    // Predicated region
    $region10: #{tpu_custom_call.1} parent=1 // pred_check
      _
    $region11: #{tpu_custom_call.1} parent=1 // pred_check_branch
      %37 = sbr.rel (0) target = $region13
    $region12: #{tpu_custom_call.1} parent=1 // pred_region
      %s39 = ssub.s32 1024, 1024
      %40 = vsyncadd [#allocation11], %s39
      %s41 = sshll.u32 [#allocation10], 4
      %s42 = int_to_ptr.vmem [resolvable:$true] %s41
      %47 = dma.hbm_to_vmem [thread:$0]  %s4, 1024, %s42, [#allocation11], 64, 64, 4
    $region13: #{tpu_custom_call.1} parent=1 // pred_fallthru
      _
    // Predicated region
    $region14: #{tpu_custom_call.1} parent=1 // pred_check
      _
    $region15: #{tpu_custom_call.1} parent=1 // pred_check_branch
      %49 = sbr.rel (0) target = $region17
    $region16: #{tpu_custom_call.1} parent=1 // pred_region
      %s51 = ssub.s32 1024, 1024
      %52 = vsyncadd [#allocation11], %s51
      %s53 = sshll.u32 [#allocation12], 4
      %s54 = int_to_ptr.vmem [resolvable:$true] %s53
      %59 = dma.hbm_to_vmem [thread:$0]  %s5, 1024, %s54, [#allocation11], 64, 64, 4
    $region17: #{tpu_custom_call.1} parent=1 // pred_fallthru
      _
    // Predicated region
    $region18: #{tpu_custom_call.1} parent=1 // pred_check
      _
    $region19: #{tpu_custom_call.1} parent=1 // pred_check_branch
      %61 = sbr.rel (0) target = $region21
    $region20: #{tpu_custom_call.1} parent=1 // pred_region
      _
    $region21: #{tpu_custom_call.1} parent=1 // pred_fallthru
      _
    // Predicated region
    $region22: #{tpu_custom_call.1} parent=1 // pred_check
      _
    $region23: #{tpu_custom_call.1} parent=1 // pred_check_branch
      %63 = sbr.rel (0) target = $region25
    $region24: #{tpu_custom_call.1} parent=1 // pred_region
      %64 = dma.done [#allocation8], 1024
    $region25: #{tpu_custom_call.1} parent=1 // pred_fallthru
      _
    // Predicated region
    $region26: #{tpu_custom_call.1} parent=1 // pred_check
      _
    $region27: #{tpu_custom_call.1} parent=1 // pred_check_branch
      %66 = sbr.rel (0) target = $region29
    $region28: #{tpu_custom_call.1} parent=1 // pred_region
      %67 = dma.done [#allocation11], 1024
    $region29: #{tpu_custom_call.1} parent=1 // pred_fallthru
      _
    // Predicated region
    $region30: #{tpu_custom_call.1} parent=1 // pred_check
      _
    $region31: #{tpu_custom_call.1} parent=1 // pred_check_branch
      %69 = sbr.rel (0) target = $region33
    $region32: #{tpu_custom_call.1} parent=1 // pred_region
      %70 = dma.done [#allocation11], 1024
    $region33: #{tpu_custom_call.1} parent=1 // pred_fallthru
      _
    %s71 = sadd.s32 0, 0
    %s72 = sld [smem:[#allocation4 + %s71]]
    %p74 = scmp.eq.s32.totalorder 0, 0
    // Predicated region
    $region34: #{tpu_custom_call.1} parent=1 // pred_check
      %p75 = pneg %p74
    $region35: #{tpu_custom_call.1} parent=1 // pred_check_branch
      %77 = sbr.rel (%p75) target = $region37
    $region36: #{tpu_custom_call.1} parent=1 // pred_region
      %78 = vst [vmem:[#allocation2] sm:$0xff] 0.0
      %79 = vst [vmem:[#allocation2 + $0x8] sm:$0xff] 0.0
      %80 = vst [vmem:[#allocation2 + $0x10] sm:$0xff] 0.0
      %81 = vst [vmem:[#allocation2 + $0x18] sm:$0xff] 0.0
      %82 = vst [vmem:[#allocation2 + $0x20] sm:$0xff] 0.0
      %83 = vst [vmem:[#allocation2 + $0x28] sm:$0xff] 0.0
      %84 = vst [vmem:[#allocation2 + $0x30] sm:$0xff] 0.0
      %85 = vst [vmem:[#allocation2 + $0x38] sm:$0xff] 0.0
      %86 = vst [vmem:[#allocation2 + $0x40] sm:$0xff] 0.0
      %87 = vst [vmem:[#allocation2 + $0x48] sm:$0xff] 0.0
      %88 = vst [vmem:[#allocation2 + $0x50] sm:$0xff] 0.0
      %89 = vst [vmem:[#allocation2 + $0x58] sm:$0xff] 0.0
      %90 = vst [vmem:[#allocation2 + $0x60] sm:$0xff] 0.0
      %91 = vst [vmem:[#allocation2 + $0x68] sm:$0xff] 0.0
      %92 = vst [vmem:[#allocation2 + $0x70] sm:$0xff] 0.0
      %93 = vst [vmem:[#allocation2 + $0x78] sm:$0xff] 0.0
    $region37: #{tpu_custom_call.1} parent=1 // pred_fallthru
      _
    %s94 = sld [smem:[#allocation5]]
    %p95 = scmp.lt.s32.totalorder 0, %s94
    // Predicated region
    $region38: #{tpu_custom_call.1} parent=1 // pred_check
      %p96 = pneg %p95
    $region39: #{tpu_custom_call.1} parent=1 // pred_check_branch
      %98 = sbr.rel (%p96) target = $region41
    $region40: #{tpu_custom_call.1} parent=1 // pred_region
      %s99 = sadd.s32 0, 0
      %s100 = sld [smem:[#allocation4 + %s99]]
      %s101 = smul.u32 %s100, 128
      %s102 = sshra.s32 %s101, 3
      %s103 = sand.u32 %s101, 7
      %s104 = smul.addr %s102, 4
      %s105 = scalar_lea.vmem [#allocation10], %s104
      %v106 = vld [vmem:[%s105] sm:$0xf]
      %v107 = vld [vmem:[%s105 + $0x4] sm:$0xf]
      %v108 = vld [vmem:[%s105 + $0x8] sm:$0xf]
      %v109 = vld [vmem:[%s105 + $0xc] sm:$0xf]
      %v110 = vld [vmem:[%s105 + $0x10] sm:$0xf]
      %v111 = vld [vmem:[%s105 + $0x14] sm:$0xf]
      %v112 = vld [vmem:[%s105 + $0x18] sm:$0xf]
      %v113 = vld [vmem:[%s105 + $0x1c] sm:$0xf]
      %v114 = vld [vmem:[%s105 + $0x20] sm:$0xf]
      %v115 = vld [vmem:[%s105 + $0x24] sm:$0xf]
      %v116 = vld [vmem:[%s105 + $0x28] sm:$0xf]
      %v117 = vld [vmem:[%s105 + $0x2c] sm:$0xf]
      %v118 = vld [vmem:[%s105 + $0x30] sm:$0xf]
      %v119 = vld [vmem:[%s105 + $0x34] sm:$0xf]
      %v120 = vld [vmem:[%s105 + $0x38] sm:$0xf]
      %v121 = vld [vmem:[%s105 + $0x3c] sm:$0xf]
      %v122 = vld [vmem:[#allocation2] sm:$0xff]
      %v123 = vld [vmem:[#allocation2 + $0x8] sm:$0xff]
      %v124 = vld [vmem:[#allocation2 + $0x10] sm:$0xff]
      %v125 = vld [vmem:[#allocation2 + $0x18] sm:$0xff]
      %v126 = vld [vmem:[#allocation2 + $0x20] sm:$0xff]
      %v127 = vld [vmem:[#allocation2 + $0x28] sm:$0xff]
      %v128 = vld [vmem:[#allocation2 + $0x30] sm:$0xff]
      %v129 = vld [vmem:[#allocation2 + $0x38] sm:$0xff]
      %v130 = vld [vmem:[#allocation2 + $0x40] sm:$0xff]
      %v131 = vld [vmem:[#allocation2 + $0x48] sm:$0xff]
      %v132 = vld [vmem:[#allocation2 + $0x50] sm:$0xff]
      %v133 = vld [vmem:[#allocation2 + $0x58] sm:$0xff]
      %v134 = vld [vmem:[#allocation2 + $0x60] sm:$0xff]
      %v135 = vld [vmem:[#allocation2 + $0x68] sm:$0xff]
      %v136 = vld [vmem:[#allocation2 + $0x70] sm:$0xff]
      %v137 = vld [vmem:[#allocation2 + $0x78] sm:$0xff]
      %v138 = vld [vmem:[#allocation7] sm:$0xf]
      %v139 = vld [vmem:[#allocation7 + $0x4] sm:$0xf]
      %v140 = vld [vmem:[#allocation7 + $0x8] sm:$0xf]
      %v141 = vld [vmem:[#allocation7 + $0xc] sm:$0xf]
      %v142 = vld [vmem:[#allocation7 + $0x10] sm:$0xf]
      %v143 = vld [vmem:[#allocation7 + $0x14] sm:$0xf]
      %v144 = vld [vmem:[#allocation7 + $0x18] sm:$0xf]
      %v145 = vld [vmem:[#allocation7 + $0x1c] sm:$0xf]
      %v146 = vld [vmem:[#allocation7 + $0x20] sm:$0xf]
      %v147 = vld [vmem:[#allocation7 + $0x24] sm:$0xf]
      %v148 = vld [vmem:[#allocation7 + $0x28] sm:$0xf]
      %v149 = vld [vmem:[#allocation7 + $0x2c] sm:$0xf]
      %v150 = vld [vmem:[#allocation7 + $0x30] sm:$0xf]
      %v151 = vld [vmem:[#allocation7 + $0x34] sm:$0xf]
      %v152 = vld [vmem:[#allocation7 + $0x38] sm:$0xf]
      %v153 = vld [vmem:[#allocation7 + $0x3c] sm:$0xf]
      %v170 = vunpack.c.l.b16 %v138
      %v171 = vunpack.c.l.b16 %v139
      %v172 = vunpack.c.l.b16 %v140
      %v173 = vunpack.c.l.b16 %v141
      %v174 = vunpack.c.l.b16 %v142
      %v175 = vunpack.c.l.b16 %v143
      %v176 = vunpack.c.l.b16 %v144
      %v177 = vunpack.c.l.b16 %v145
      %v178 = vunpack.c.l.b16 %v146
      %v179 = vunpack.c.l.b16 %v147
      %v180 = vunpack.c.l.b16 %v148
      %v181 = vunpack.c.l.b16 %v149
      %v182 = vunpack.c.l.b16 %v150
      %v183 = vunpack.c.l.b16 %v151
      %v184 = vunpack.c.l.b16 %v152
      %v185 = vunpack.c.l.b16 %v153
      %v186 = vpack.c.b16 %v171, %v170
      %v187 = vpack.c.b16 %v173, %v172
      %v188 = vpack.c.b16 %v175, %v174
      %v189 = vpack.c.b16 %v177, %v176
      %v190 = vpack.c.b16 %v179, %v178
      %v191 = vpack.c.b16 %v181, %v180
      %v192 = vpack.c.b16 %v183, %v182
      %v193 = vpack.c.b16 %v185, %v184
      %v218 = vunpack.c.l.b16 %v106
      %v219 = vunpack.c.l.b16 %v107
      %v220 = vunpack.c.l.b16 %v108
      %v221 = vunpack.c.l.b16 %v109
      %v222 = vunpack.c.l.b16 %v110
      %v223 = vunpack.c.l.b16 %v111
      %v224 = vunpack.c.l.b16 %v112
      %v225 = vunpack.c.l.b16 %v113
      %v226 = vunpack.c.l.b16 %v114
      %v227 = vunpack.c.l.b16 %v115
      %v228 = vunpack.c.l.b16 %v116
      %v229 = vunpack.c.l.b16 %v117
      %v230 = vunpack.c.l.b16 %v118
      %v231 = vunpack.c.l.b16 %v119
      %v232 = vunpack.c.l.b16 %v120
      %v233 = vunpack.c.l.b16 %v121
      %v234 = vpack.c.b16 %v219, %v218
      %v235 = vpack.c.b16 %v221, %v220
      %v236 = vpack.c.b16 %v223, %v222
      %v237 = vpack.c.b16 %v225, %v224
      %v238 = vpack.c.b16 %v227, %v226
      %v239 = vpack.c.b16 %v229, %v228
      %v240 = vpack.c.b16 %v231, %v230
      %v241 = vpack.c.b16 %v233, %v232
      %250 = vmatprep.subr.bf16.mxu0 0
      %251 = vmatpush1.bf16.msra.mxu0 %v234
      %252 = vmatprep.subr.bf16.mxu0 0
      %253 = vmatpush1.bf16.msra.mxu0 %v235
      %254 = vmatprep.subr.bf16.mxu0 0
      %255 = vmatpush1.bf16.msra.mxu0 %v236
      %256 = vmatprep.subr.bf16.mxu0 0
      %257 = vmatpush1.bf16.msra.mxu0 %v237
      %258 = vmatprep.subr.bf16.mxu0 0
      %259 = vmatpush1.bf16.msra.mxu0 %v238
      %260 = vmatprep.subr.bf16.mxu0 0
      %261 = vmatpush1.bf16.msra.mxu0 %v239
      %262 = vmatprep.subr.bf16.mxu0 0
      %263 = vmatpush1.bf16.msra.mxu0 %v240
      %264 = vmatprep.subr.bf16.mxu0 0
      %265 = vmatpush1.bf16.msra.mxu0 %v241
      %266 = vmatprep.subr.bf16.mxu0 0
      %267 = vmatpush1.bf16.msra.mxu0 0
      %268 = vmatprep.subr.bf16.mxu0 0
      %269 = vmatpush1.bf16.msra.mxu0 0
      %270 = vmatprep.subr.bf16.mxu0 0
      %271 = vmatpush1.bf16.msra.mxu0 0
      %272 = vmatprep.subr.bf16.mxu0 0
      %273 = vmatpush1.bf16.msra.mxu0 0
      %274 = vmatprep.subr.bf16.mxu0 0
      %275 = vmatpush1.bf16.msra.mxu0 0
      %276 = vmatprep.subr.bf16.mxu0 0
      %277 = vmatpush1.bf16.msra.mxu0 0
      %278 = vmatprep.subr.bf16.mxu0 0
      %279 = vmatpush1.bf16.msra.mxu0 0
      %280 = vmatprep.subr.bf16.mxu0 0
      %281 = vmatpush1.bf16.msra.mxu0 0
      %282 = vmatprep.mubr.bf16.mxu0 0
      %283 = vmatmul.mubr.bf16.gmra.mrb[0].mxu0 %v186
      %v284 = vpop.f32.mrb[0].mxu0
      %v285 = vadd.f32 0.0, %v284
      %v286 = vpop.f32.mrb[0].mxu0
      %v287 = vpop.f32.mrb[0].mxu0
      %v288 = vadd.f32 0.0, %v287
      %v289 = vpop.f32.mrb[0].mxu0
      %290 = vmatprep.mubr.bf16.mxu0 0
      %291 = vmatmul.mubr.bf16.gmra.mrb[0].mxu0 %v187
      %v292 = vpop.f32.mrb[0].mxu0
      %v293 = vadd.f32 0.0, %v292
      %v294 = vpop.f32.mrb[0].mxu0
      %v295 = vpop.f32.mrb[0].mxu0
      %v296 = vadd.f32 0.0, %v295
      %v297 = vpop.f32.mrb[0].mxu0
      %298 = vmatprep.mubr.bf16.mxu0 0
      %299 = vmatmul.mubr.bf16.gmra.mrb[0].mxu0 %v188
      %v300 = vpop.f32.mrb[0].mxu0
      %v301 = vadd.f32 0.0, %v300
      %v302 = vpop.f32.mrb[0].mxu0
      %v303 = vpop.f32.mrb[0].mxu0
      %v304 = vadd.f32 0.0, %v303
      %v305 = vpop.f32.mrb[0].mxu0
      %306 = vmatprep.mubr.bf16.mxu0 0
      %307 = vmatmul.mubr.bf16.gmra.mrb[0].mxu0 %v189
      %v308 = vpop.f32.mrb[0].mxu0
      %v309 = vadd.f32 0.0, %v308
      %v310 = vpop.f32.mrb[0].mxu0
      %v311 = vpop.f32.mrb[0].mxu0
      %v312 = vadd.f32 0.0, %v311
      %v313 = vpop.f32.mrb[0].mxu0
      %314 = vmatprep.mubr.bf16.mxu0 0
      %315 = vmatmul.mubr.bf16.gmra.mrb[0].mxu0 %v190
      %v316 = vpop.f32.mrb[0].mxu0
      %v317 = vadd.f32 0.0, %v316
      %v318 = vpop.f32.mrb[0].mxu0
      %v319 = vpop.f32.mrb[0].mxu0
      %v320 = vadd.f32 0.0, %v319
      %v321 = vpop.f32.mrb[0].mxu0
      %322 = vmatprep.mubr.bf16.mxu0 0
      %323 = vmatmul.mubr.bf16.gmra.mrb[0].mxu0 %v191
      %v324 = vpop.f32.mrb[0].mxu0
      %v325 = vadd.f32 0.0, %v324
      %v326 = vpop.f32.mrb[0].mxu0
      %v327 = vpop.f32.mrb[0].mxu0
      %v328 = vadd.f32 0.0, %v327
      %v329 = vpop.f32.mrb[0].mxu0
      %330 = vmatprep.mubr.bf16.mxu0 0
      %331 = vmatmul.mubr.bf16.gmra.mrb[0].mxu0 %v192
      %v332 = vpop.f32.mrb[0].mxu0
      %v333 = vadd.f32 0.0, %v332
      %v334 = vpop.f32.mrb[0].mxu0
      %v335 = vpop.f32.mrb[0].mxu0
      %v336 = vadd.f32 0.0, %v335
      %v337 = vpop.f32.mrb[0].mxu0
      %338 = vmatprep.mubr.bf16.mxu0 0
      %339 = vmatmul.mubr.bf16.gmra.mrb[0].mxu0 %v193
      %v340 = vpop.f32.mrb[0].mxu0
      %v341 = vadd.f32 0.0, %v340
      %v342 = vpop.f32.mrb[0].mxu0
      %v343 = vpop.f32.mrb[0].mxu0
      %v344 = vadd.f32 0.0, %v343
      %v345 = vpop.f32.mrb[0].mxu0
      %346 = vdwg.mxu0
      %v347 = vadd.f32 %v122, %v285
      %v348 = vadd.f32 %v123, %v288
      %v349 = vadd.f32 %v124, %v293
      %v350 = vadd.f32 %v125, %v296
      %v351 = vadd.f32 %v126, %v301
      %v352 = vadd.f32 %v127, %v304
      %v353 = vadd.f32 %v128, %v309
      %v354 = vadd.f32 %v129, %v312
      %v355 = vadd.f32 %v130, %v317
      %v356 = vadd.f32 %v131, %v320
      %v357 = vadd.f32 %v132, %v325
      %v358 = vadd.f32 %v133, %v328
      %v359 = vadd.f32 %v134, %v333
      %v360 = vadd.f32 %v135, %v336
      %v361 = vadd.f32 %v136, %v341
      %v362 = vadd.f32 %v137, %v344
      %363 = vst [vmem:[#allocation2] sm:$0xff] %v347
      %364 = vst [vmem:[#allocation2 + $0x8] sm:$0xff] %v348
      %365 = vst [vmem:[#allocation2 + $0x10] sm:$0xff] %v349
      %366 = vst [vmem:[#allocation2 + $0x18] sm:$0xff] %v350
      %367 = vst [vmem:[#allocation2 + $0x20] sm:$0xff] %v351
      %368 = vst [vmem:[#allocation2 + $0x28] sm:$0xff] %v352
      %369 = vst [vmem:[#allocation2 + $0x30] sm:$0xff] %v353
      %370 = vst [vmem:[#allocation2 + $0x38] sm:$0xff] %v354
      %371 = vst [vmem:[#allocation2 + $0x40] sm:$0xff] %v355
      %372 = vst [vmem:[#allocation2 + $0x48] sm:$0xff] %v356
      %373 = vst [vmem:[#allocation2 + $0x50] sm:$0xff] %v357
      %374 = vst [vmem:[#allocation2 + $0x58] sm:$0xff] %v358
      %375 = vst [vmem:[#allocation2 + $0x60] sm:$0xff] %v359
      %376 = vst [vmem:[#allocation2 + $0x68] sm:$0xff] %v360
      %377 = vst [vmem:[#allocation2 + $0x70] sm:$0xff] %v361
      %378 = vst [vmem:[#allocation2 + $0x78] sm:$0xff] %v362
    $region41: #{tpu_custom_call.1} parent=1 // pred_fallthru
      _
    // Predicated region
    $region42: #{tpu_custom_call.1} parent=1 // pred_check
      %p379 = pneg %p74
    $region43: #{tpu_custom_call.1} parent=1 // pred_check_branch
      %381 = sbr.rel (%p379) target = $region45
    $region44: #{tpu_custom_call.1} parent=1 // pred_region
      %v382 = vld [vmem:[#allocation2] sm:$0xff]
      %v383 = vld [vmem:[#allocation2 + $0x8] sm:$0xff]
      %v384 = vld [vmem:[#allocation2 + $0x10] sm:$0xff]
      %v385 = vld [vmem:[#allocation2 + $0x18] sm:$0xff]
      %v386 = vld [vmem:[#allocation2 + $0x20] sm:$0xff]
      %v387 = vld [vmem:[#allocation2 + $0x28] sm:$0xff]
      %v388 = vld [vmem:[#allocation2 + $0x30] sm:$0xff]
      %v389 = vld [vmem:[#allocation2 + $0x38] sm:$0xff]
      %v390 = vld [vmem:[#allocation2 + $0x40] sm:$0xff]
      %v391 = vld [vmem:[#allocation2 + $0x48] sm:$0xff]
      %v392 = vld [vmem:[#allocation2 + $0x50] sm:$0xff]
      %v393 = vld [vmem:[#allocation2 + $0x58] sm:$0xff]
      %v394 = vld [vmem:[#allocation2 + $0x60] sm:$0xff]
      %v395 = vld [vmem:[#allocation2 + $0x68] sm:$0xff]
      %v396 = vld [vmem:[#allocation2 + $0x70] sm:$0xff]
      %v397 = vld [vmem:[#allocation2 + $0x78] sm:$0xff]
      %v398 = vpack.c.bf16 %v383, %v382
      %v399 = vpack.c.bf16 %v385, %v384
      %v400 = vpack.c.bf16 %v387, %v386
      %v401 = vpack.c.bf16 %v389, %v388
      %v402 = vpack.c.bf16 %v391, %v390
      %v403 = vpack.c.bf16 %v393, %v392
      %v404 = vpack.c.bf16 %v395, %v394
      %v405 = vpack.c.bf16 %v397, %v396
      %v406 = vld [vmem:[#allocation12] sm:$0xf]
      %v407 = vld [vmem:[#allocation12 + $0x4] sm:$0xf]
      %v408 = vld [vmem:[#allocation12 + $0x8] sm:$0xf]
      %v409 = vld [vmem:[#allocation12 + $0xc] sm:$0xf]
      %v410 = vld [vmem:[#allocation12 + $0x10] sm:$0xf]
      %v411 = vld [vmem:[#allocation12 + $0x14] sm:$0xf]
      %v412 = vld [vmem:[#allocation12 + $0x18] sm:$0xf]
      %v413 = vld [vmem:[#allocation12 + $0x1c] sm:$0xf]
      %v414 = vld [vmem:[#allocation12 + $0x20] sm:$0xf]
      %v415 = vld [vmem:[#allocation12 + $0x24] sm:$0xf]
      %v416 = vld [vmem:[#allocation12 + $0x28] sm:$0xf]
      %v417 = vld [vmem:[#allocation12 + $0x2c] sm:$0xf]
      %v418 = vld [vmem:[#allocation12 + $0x30] sm:$0xf]
      %v419 = vld [vmem:[#allocation12 + $0x34] sm:$0xf]
      %v420 = vld [vmem:[#allocation12 + $0x38] sm:$0xf]
      %v421 = vld [vmem:[#allocation12 + $0x3c] sm:$0xf]
      %v422 = vld [vmem:[%s6] sm:$0x1]
      %v424 = vlaneseq
      %v425 = vshrl.u32 %v424, 7
      %v426 = vsub.s32 0, %v425
      %v427 = vrot.slane %v422, %v426
      %v445 = vunpack.c.l.b16 %v406
      %v446 = vunpack.c.l.b16 %v407
      %v447 = vunpack.c.l.b16 %v408
      %v448 = vunpack.c.l.b16 %v409
      %v449 = vunpack.c.l.b16 %v410
      %v450 = vunpack.c.l.b16 %v411
      %v451 = vunpack.c.l.b16 %v412
      %v452 = vunpack.c.l.b16 %v413
      %v453 = vunpack.c.l.b16 %v414
      %v454 = vunpack.c.l.b16 %v415
      %v455 = vunpack.c.l.b16 %v416
      %v456 = vunpack.c.l.b16 %v417
      %v457 = vunpack.c.l.b16 %v418
      %v458 = vunpack.c.l.b16 %v419
      %v459 = vunpack.c.l.b16 %v420
      %v460 = vunpack.c.l.b16 %v421
      %v461 = vpack.c.b16 %v446, %v445
      %v462 = vpack.c.b16 %v448, %v447
      %v463 = vpack.c.b16 %v450, %v449
      %v464 = vpack.c.b16 %v452, %v451
      %v465 = vpack.c.b16 %v454, %v453
      %v466 = vpack.c.b16 %v456, %v455
      %v467 = vpack.c.b16 %v458, %v457
      %v468 = vpack.c.b16 %v460, %v459
      %477 = vmatprep.subr.bf16.mxu0 0
      %478 = vmatpush1.bf16.msra.mxu0 %v461
      %479 = vmatprep.subr.bf16.mxu0 0
      %480 = vmatpush1.bf16.msra.mxu0 %v462
      %481 = vmatprep.subr.bf16.mxu0 0
      %482 = vmatpush1.bf16.msra.mxu0 %v463
      %483 = vmatprep.subr.bf16.mxu0 0
      %484 = vmatpush1.bf16.msra.mxu0 %v464
      %485 = vmatprep.subr.bf16.mxu0 0
      %486 = vmatpush1.bf16.msra.mxu0 %v465
      %487 = vmatprep.subr.bf16.mxu0 0
      %488 = vmatpush1.bf16.msra.mxu0 %v466
      %489 = vmatprep.subr.bf16.mxu0 0
      %490 = vmatpush1.bf16.msra.mxu0 %v467
      %491 = vmatprep.subr.bf16.mxu0 0
      %492 = vmatpush1.bf16.msra.mxu0 %v468
      %493 = vmatprep.subr.bf16.mxu0 0
      %494 = vmatpush1.bf16.msra.mxu0 0
      %495 = vmatprep.subr.bf16.mxu0 0
      %496 = vmatpush1.bf16.msra.mxu0 0
      %497 = vmatprep.subr.bf16.mxu0 0
      %498 = vmatpush1.bf16.msra.mxu0 0
      %499 = vmatprep.subr.bf16.mxu0 0
      %500 = vmatpush1.bf16.msra.mxu0 0
      %501 = vmatprep.subr.bf16.mxu0 0
      %502 = vmatpush1.bf16.msra.mxu0 0
      %503 = vmatprep.subr.bf16.mxu0 0
      %504 = vmatpush1.bf16.msra.mxu0 0
      %505 = vmatprep.subr.bf16.mxu0 0
      %506 = vmatpush1.bf16.msra.mxu0 0
      %507 = vmatprep.subr.bf16.mxu0 0
      %508 = vmatpush1.bf16.msra.mxu0 0
      %509 = vmatprep.mubr.bf16.mxu0 0
      %510 = vmatmul.mubr.bf16.gmra.mrb[0].mxu0 %v398
      %v511 = vpop.f32.mrb[0].mxu0
      %v512 = vadd.f32 %v427, %v511
      %v513 = vpop.f32.mrb[0].mxu0
      %v514 = vpop.f32.mrb[0].mxu0
      %v515 = vadd.f32 %v427, %v514
      %v516 = vpop.f32.mrb[0].mxu0
      %517 = vmatprep.mubr.bf16.mxu0 0
      %518 = vmatmul.mubr.bf16.gmra.mrb[0].mxu0 %v399
      %v519 = vpop.f32.mrb[0].mxu0
      %v520 = vadd.f32 %v427, %v519
      %v521 = vpop.f32.mrb[0].mxu0
      %v522 = vpop.f32.mrb[0].mxu0
      %v523 = vadd.f32 %v427, %v522
      %v524 = vpop.f32.mrb[0].mxu0
      %525 = vmatprep.mubr.bf16.mxu0 0
      %526 = vmatmul.mubr.bf16.gmra.mrb[0].mxu0 %v400
      %v527 = vpop.f32.mrb[0].mxu0
      %v528 = vadd.f32 %v427, %v527
      %v529 = vpop.f32.mrb[0].mxu0
      %v530 = vpop.f32.mrb[0].mxu0
      %v531 = vadd.f32 %v427, %v530
      %v532 = vpop.f32.mrb[0].mxu0
      %533 = vmatprep.mubr.bf16.mxu0 0
      %534 = vmatmul.mubr.bf16.gmra.mrb[0].mxu0 %v401
      %v535 = vpop.f32.mrb[0].mxu0
      %v536 = vadd.f32 %v427, %v535
      %v537 = vpop.f32.mrb[0].mxu0
      %v538 = vpop.f32.mrb[0].mxu0
      %v539 = vadd.f32 %v427, %v538
      %v540 = vpop.f32.mrb[0].mxu0
      %541 = vmatprep.mubr.bf16.mxu0 0
      %542 = vmatmul.mubr.bf16.gmra.mrb[0].mxu0 %v402
      %v543 = vpop.f32.mrb[0].mxu0
      %v544 = vadd.f32 %v427, %v543
      %v545 = vpop.f32.mrb[0].mxu0
      %v546 = vpop.f32.mrb[0].mxu0
      %v547 = vadd.f32 %v427, %v546
      %v548 = vpop.f32.mrb[0].mxu0
      %549 = vmatprep.mubr.bf16.mxu0 0
      %550 = vmatmul.mubr.bf16.gmra.mrb[0].mxu0 %v403
      %v551 = vpop.f32.mrb[0].mxu0
      %v552 = vadd.f32 %v427, %v551
      %v553 = vpop.f32.mrb[0].mxu0
      %v554 = vpop.f32.mrb[0].mxu0
      %v555 = vadd.f32 %v427, %v554
      %v556 = vpop.f32.mrb[0].mxu0
      %557 = vmatprep.mubr.bf16.mxu0 0
      %558 = vmatmul.mubr.bf16.gmra.mrb[0].mxu0 %v404
      %v559 = vpop.f32.mrb[0].mxu0
      %v560 = vadd.f32 %v427, %v559
      %v561 = vpop.f32.mrb[0].mxu0
      %v562 = vpop.f32.mrb[0].mxu0
      %v563 = vadd.f32 %v427, %v562
      %v564 = vpop.f32.mrb[0].mxu0
      %565 = vmatprep.mubr.bf16.mxu0 0
      %566 = vmatmul.mubr.bf16.gmra.mrb[0].mxu0 %v405
      %v567 = vpop.f32.mrb[0].mxu0
      %v568 = vadd.f32 %v427, %v567
      %v569 = vpop.f32.mrb[0].mxu0
      %v570 = vpop.f32.mrb[0].mxu0
      %v571 = vadd.f32 %v427, %v570
      %v572 = vpop.f32.mrb[0].mxu0
      %573 = vdwg.mxu0
      %s574 = sld [smem:[#allocation6]]
      %vm575 = vcmp.gt.f32.partialorder %v512, 0.0
      %vm576 = vcmp.gt.f32.partialorder %v515, 0.0
      %vm577 = vcmp.gt.f32.partialorder %v520, 0.0
      %vm578 = vcmp.gt.f32.partialorder %v523, 0.0
      %vm579 = vcmp.gt.f32.partialorder %v528, 0.0
      %vm580 = vcmp.gt.f32.partialorder %v531, 0.0
      %vm581 = vcmp.gt.f32.partialorder %v536, 0.0
      %vm582 = vcmp.gt.f32.partialorder %v539, 0.0
      %vm583 = vcmp.gt.f32.partialorder %v544, 0.0
      %vm584 = vcmp.gt.f32.partialorder %v547, 0.0
      %vm585 = vcmp.gt.f32.partialorder %v552, 0.0
      %vm586 = vcmp.gt.f32.partialorder %v555, 0.0
      %vm587 = vcmp.gt.f32.partialorder %v560, 0.0
      %vm588 = vcmp.gt.f32.partialorder %v563, 0.0
      %vm589 = vcmp.gt.f32.partialorder %v568, 0.0
      %vm590 = vcmp.gt.f32.partialorder %v571, 0.0
      %v591 = vstv %s574
      %v592 = vmul.f32 %v591, %v512
      %v593 = vmul.f32 %v591, %v515
      %v594 = vmul.f32 %v591, %v520
      %v595 = vmul.f32 %v591, %v523
      %v596 = vmul.f32 %v591, %v528
      %v597 = vmul.f32 %v591, %v531
      %v598 = vmul.f32 %v591, %v536
      %v599 = vmul.f32 %v591, %v539
      %v600 = vmul.f32 %v591, %v544
      %v601 = vmul.f32 %v591, %v547
      %v602 = vmul.f32 %v591, %v552
      %v603 = vmul.f32 %v591, %v555
      %v604 = vmul.f32 %v591, %v560
      %v605 = vmul.f32 %v591, %v563
      %v606 = vmul.f32 %v591, %v568
      %v607 = vmul.f32 %v591, %v571
      %v608 = vsel %vm575, %v512, %v592
      %v609 = vsel %vm576, %v515, %v593
      %v610 = vsel %vm577, %v520, %v594
      %v611 = vsel %vm578, %v523, %v595
      %v612 = vsel %vm579, %v528, %v596
      %v613 = vsel %vm580, %v531, %v597
      %v614 = vsel %vm581, %v536, %v598
      %v615 = vsel %vm582, %v539, %v599
      %v616 = vsel %vm583, %v544, %v600
      %v617 = vsel %vm584, %v547, %v601
      %v618 = vsel %vm585, %v552, %v602
      %v619 = vsel %vm586, %v555, %v603
      %v620 = vsel %vm587, %v560, %v604
      %v621 = vsel %vm588, %v563, %v605
      %v622 = vsel %vm589, %v568, %v606
      %v623 = vsel %vm590, %v571, %v607
      %624 = vst [vmem:[#allocation13] sm:$0xff] %v608
      %625 = vst [vmem:[#allocation13 + $0x8] sm:$0xff] %v609
      %626 = vst [vmem:[#allocation13 + $0x10] sm:$0xff] %v610
      %627 = vst [vmem:[#allocation13 + $0x18] sm:$0xff] %v611
      %628 = vst [vmem:[#allocation13 + $0x20] sm:$0xff] %v612
      %629 = vst [vmem:[#allocation13 + $0x28] sm:$0xff] %v613
      %630 = vst [vmem:[#allocation13 + $0x30] sm:$0xff] %v614
      %631 = vst [vmem:[#allocation13 + $0x38] sm:$0xff] %v615
      %632 = vst [vmem:[#allocation13 + $0x40] sm:$0xff] %v616
      %633 = vst [vmem:[#allocation13 + $0x48] sm:$0xff] %v617
      %634 = vst [vmem:[#allocation13 + $0x50] sm:$0xff] %v618
      %635 = vst [vmem:[#allocation13 + $0x58] sm:$0xff] %v619
      %636 = vst [vmem:[#allocation13 + $0x60] sm:$0xff] %v620
      %637 = vst [vmem:[#allocation13 + $0x68] sm:$0xff] %v621
      %638 = vst [vmem:[#allocation13 + $0x70] sm:$0xff] %v622
      %639 = vst [vmem:[#allocation13 + $0x78] sm:$0xff] %v623
    $region45: #{tpu_custom_call.1} parent=1 // pred_fallthru
      _
    // Predicated region
    $region46: #{tpu_custom_call.1} parent=1 // pred_check
      _
    $region47: #{tpu_custom_call.1} parent=1 // pred_check_branch
      %641 = sbr.rel (0) target = $region49
    $region48: #{tpu_custom_call.1} parent=1 // pred_region
      %s643 = ssub.s32 2048, 2048
      %644 = vsyncadd [#allocation9], %s643
      %s645 = sshll.u32 [#allocation13], 4
      %s646 = int_to_ptr.vmem [resolvable:$true] %s645
      %651 = dma.vmem_to_hbm [thread:$0]  %s646, 2048, %s7, [#allocation9], 128, 128, 8
    $region49: #{tpu_custom_call.1} parent=1 // pred_fallthru
      _
    // Predicated region
    $region50: #{tpu_custom_call.1} parent=1 // pred_check
      _
    $region51: #{tpu_custom_call.1} parent=1 // pred_check_branch
      %653 = sbr.rel (0) target = $region53
    $region52: #{tpu_custom_call.1} parent=1 // pred_region
      %654 = dma.done [#allocation9], 2048
    $region53: #{tpu_custom_call.1} parent=1 // pred_fallthru
      _
    %655 = vsyncpa [#allocation8], 1
    %656 = vsyncpa [#allocation11], 1
    %657 = vsyncpa [#allocation9], 1

</llo_original>
